<compile_context>
chip_gen: v7x
topology: tpu7x:2x2x1
jax: 0.10.0
libtpu: 0.0.40
codegen_flags: <defaults>
</compile_context>

<pallas_src>
import jax
import jax.numpy as jnp
from jax.experimental import pallas as pl
from jax.experimental.pallas import tpu as pltpu

SMOOTH = 1.0
_BLOCK_BUDGET_BYTES = 4 * 1024 * 1024   # per input, per pipeline buffer
_VMEM_LIMIT_BYTES = 40 * 1024 * 1024    # 2 in x 2 buf x 4 MiB + strips + headroom (< v7x 64 MiB)


def _dice_kernel(yp_ref, yt_ref, inter_ref, both_ref):
    """One grid step: stream a (tile_n, tile_r, L) slab of channel-0 data and
    fold it into this batch-block's (1, L) partial-sum output strips."""
    j = pl.program_id(1)  # row-block index (reduction axis)

    @pl.when(j == 0)
    def _():
        inter_ref[...] = jnp.zeros_like(inter_ref)
        both_ref[...] = jnp.zeros_like(both_ref)

    yp = yp_ref[...].astype(jnp.float32)
    yt = yt_ref[...].astype(jnp.float32)

    # Per-step partial reduction (tile_n, tile_r, L) -> (1, L):
    #   axis-0 reduce = element-wise vreg adds (VPU),
    #   axis-0-of-2D reduce = cross-sublane reduce (XLU, idle slot here).
    # Both are hidden under the input DMA; no full-tile accumulator stores.
    p = yp * yt
    s = yp + yt
    inter_ref[...] += jnp.sum(jnp.sum(p, axis=0), axis=0, keepdims=True)
    both_ref[...] += jnp.sum(jnp.sum(s, axis=0), axis=0, keepdims=True)


def _largest_divisor(n, cap, multiple_of=1):
    """Largest d with n % d == 0, d <= cap, d % multiple_of == 0 (0 if none)."""
    cap = max(1, min(n, cap))
    best = 0
    for d in range(1, cap + 1):
        if n % d == 0 and d % multiple_of == 0:
            best = d
    return best


def dice_loss(y_pred, y_true):
    assert y_pred.shape == y_true.shape
    assert y_pred.ndim == 4, "DiceLoss kernel expects NCHW inputs"
    N, C, H, W = y_pred.shape
    del C  # only channel 0 is read (pinned via the BlockSpec index_map)

    itemsize = max(jnp.dtype(y_pred.dtype).itemsize,
                   jnp.dtype(y_true.dtype).itemsize)
    plane = H * W

    # Lane-dense presentation of the channel-0 plane: (R, 128) rows when
    # possible (free metadata reshape — plane is contiguous in NCHW).
    if plane % 128 == 0:
        R, L = plane // 128, 128
    else:
        # TODO(synk): pad-and-mask to 128 lanes for awkward W; for now keep
        # the native (H, W) layout (correct, just lane-sparse for narrow W).
        R, L = H, W
    yp4 = y_pred.reshape(N, -1, R, L)
    yt4 = y_true.reshape(N, -1, R, L)

    row_bytes = L * itemsize
    plane_bytes = R * row_bytes
    budget = _BLOCK_BUDGET_BYTES

    if plane_bytes <= budget:
        # Whole plane(s) per step; fold batch samples to amortize per-step
        # overhead, but keep >=2 batch blocks when N >= 2 so the batch axis
        # can split across TensorCores on v7x.
        tile_r = R
        cap_n = max(1, budget // plane_bytes)
        if N >= 2:
            cap_n = min(cap_n, N // 2)
        tile_n = max(1, _largest_divisor(N, cap_n))
    else:
        tile_n = 1
        cap_r = max(1, budget // row_bytes)
        tile_r = _largest_divisor(R, cap_r, multiple_of=8)
        if tile_r == 0:
            # No multiple-of-8 divisor fits the budget; fall back to the full
            # plane (may need a larger vmem limit for extreme shapes).
            tile_r = R

    grid = (N // tile_n, R // tile_r)

    # Channel block pinned to 0 -> other channels are never DMA'd.
    in_spec = pl.BlockSpec((tile_n, None, tile_r, L), lambda i, j: (i, 0, j, 0))
    # Per-batch-block output strips: indexed by i only, so they stay resident
    # across the row (reduction) axis j.
    out_spec = pl.BlockSpec((None, 1, L), lambda i, j: (i, 0, 0))

    elems = N * R * L  # channel-0 elements actually streamed
    inter_p, both_p = pl.pallas_call(
        _dice_kernel,
        out_shape=(
            jax.ShapeDtypeStruct((grid[0], 1, L), jnp.float32),
            jax.ShapeDtypeStruct((grid[0], 1, L), jnp.float32),
        ),
        grid_spec=pltpu.PrefetchScalarGridSpec(
            num_scalar_prefetch=0,
            grid=grid,
            in_specs=[in_spec, in_spec],
            out_specs=[out_spec, out_spec],
        ),
        compiler_params=pltpu.CompilerParams(
            # Batch blocks are independent (own output strips) -> parallel;
            # the row axis reduces into the resident output -> arbitrary.
            dimension_semantics=("parallel", "arbitrary"),
            vmem_limit_bytes=_VMEM_LIMIT_BYTES,
        ),
        cost_estimate=pl.CostEstimate(
            flops=3 * elems,
            transcendentals=0,
            bytes_accessed=2 * elems * itemsize,
        ),
    )(yp4, yt4)

    # Tiny final combine + dice math in plain JAX (negligible work).
    intersection = jnp.sum(inter_p)
    total = jnp.sum(both_p)  # sum(y_pred) + sum(y_true) over channel 0
    dsc = (2.0 * intersection + SMOOTH) / (total + SMOOTH)
    return 1.0 - dsc


def _dice_loss_ref(y_pred, y_true):
    yp = y_pred[:, 0].reshape(-1).astype(jnp.float32)
    yt = y_true[:, 0].reshape(-1).astype(jnp.float32)
    inter = jnp.sum(yp * yt)
    dsc = (2.0 * inter + SMOOTH) / (jnp.sum(yp) + jnp.sum(yt) + SMOOTH)
    return 1.0 - dsc


if __name__ == "__main__":
    key = jax.random.PRNGKey(0)
    k1, k2 = jax.random.split(key)
    # Small, module-consistent shapes: batch=2, channels=4, spatial=16x16.
    y_pred = jax.random.uniform(k1, (2, 4, 16, 16), dtype=jnp.float32)
    y_true = (jax.random.uniform(k2, (2, 4, 16, 16)) > 0.5).astype(jnp.float32)

    loss = jax.jit(dice_loss)(y_pred, y_true)
    loss = jax.block_until_ready(loss)

    ref = _dice_loss_ref(y_pred, y_true)
    assert jnp.allclose(loss, ref, atol=1e-5, rtol=1e-5), (loss, ref)
    print("KERNEL_OK")
</pallas_src>

<mosaic_0001>
module attributes {stable_mosaic.version = 11 : i64} {
  func.func @_dice_kernel(%arg0: i32, %arg1: i32, %arg2: memref<1x1x2x128xf32, #tpu.memory_space<vmem>>, %arg3: memref<1x1x2x128xf32, #tpu.memory_space<vmem>>, %arg4: memref<1x1x128xf32, #tpu.memory_space<vmem>>, %arg5: memref<1x1x128xf32, #tpu.memory_space<vmem>>) attributes {dimension_semantics = [#tpu.dimension_semantics<parallel>, #tpu.dimension_semantics<arbitrary>], iteration_bounds = array<i64: 2, 1>, scalar_prefetch = 0 : i64, scratch_operands = 0 : i64, tpu.core_type = #tpu.core_type<tc>, window_params = [{transform_indices = @transform_0, window_bounds = array<i64: 1, 1, 2, 128>}, {transform_indices = @transform_1, window_bounds = array<i64: 1, 1, 2, 128>}, {transform_indices = @transform_2, window_bounds = array<i64: 1, 1, 128>}, {transform_indices = @transform_3, window_bounds = array<i64: 1, 1, 128>}]} {
    %c0_i32 = arith.constant 0 : i32
    %0 = arith.cmpi eq, %arg1, %c0_i32 : i32
    %1 = arith.extui %0 : i1 to i32
    %c0_i32_0 = arith.constant 0 : i32
    %2 = arith.cmpi ne, %1, %c0_i32_0 : i32
    scf.if %2 {
      %cst_23 = arith.constant 0.000000e+00 : f32
      %27 = vector.broadcast %cst_23 : f32 to vector<1x128xf32>
      %c0_24 = arith.constant 0 : index
      %c0_25 = arith.constant 0 : index
      %c0_26 = arith.constant 0 : index
      %28 = vector.load %arg4[%c0_24, %c0_25, %c0_26] : memref<1x1x128xf32, #tpu.memory_space<vmem>>, vector<1x1x128xf32>
      %29 = vector.shape_cast %28 : vector<1x1x128xf32> to vector<1x128xf32>
      %30 = vector.shape_cast %27 : vector<1x128xf32> to vector<1x1x128xf32>
      tpu.vector_store %arg4[%c0_24, %c0_25, %c0_26], %30 {strides = array<i32>} : memref<1x1x128xf32, #tpu.memory_space<vmem>>, vector<1x1x128xf32>,
      %cst_27 = arith.constant 0.000000e+00 : f32
      %31 = vector.broadcast %cst_27 : f32 to vector<1x128xf32>
      %c0_28 = arith.constant 0 : index
      %c0_29 = arith.constant 0 : index
      %c0_30 = arith.constant 0 : index
      %32 = vector.load %arg5[%c0_28, %c0_29, %c0_30] : memref<1x1x128xf32, #tpu.memory_space<vmem>>, vector<1x1x128xf32>
      %33 = vector.shape_cast %32 : vector<1x1x128xf32> to vector<1x128xf32>
      %34 = vector.shape_cast %31 : vector<1x128xf32> to vector<1x1x128xf32>
      tpu.vector_store %arg5[%c0_28, %c0_29, %c0_30], %34 {strides = array<i32>} : memref<1x1x128xf32, #tpu.memory_space<vmem>>, vector<1x1x128xf32>,
    } else {
    }
    %c0 = arith.constant 0 : index
    %c0_1 = arith.constant 0 : index
    %c0_2 = arith.constant 0 : index
    %c0_3 = arith.constant 0 : index
    %3 = vector.load %arg2[%c0, %c0_1, %c0_2, %c0_3] : memref<1x1x2x128xf32, #tpu.memory_space<vmem>>, vector<1x1x2x128xf32>
    %4 = vector.shape_cast %3 : vector<1x1x2x128xf32> to vector<1x2x128xf32>
    %c0_4 = arith.constant 0 : index
    %c0_5 = arith.constant 0 : index
    %c0_6 = arith.constant 0 : index
    %c0_7 = arith.constant 0 : index
    %5 = vector.load %arg3[%c0_4, %c0_5, %c0_6, %c0_7] : memref<1x1x2x128xf32, #tpu.memory_space<vmem>>, vector<1x1x2x128xf32>
    %6 = vector.shape_cast %5 : vector<1x1x2x128xf32> to vector<1x2x128xf32>
    %7 = arith.mulf %4, %6 : vector<1x2x128xf32>
    %8 = arith.addf %4, %6 : vector<1x2x128xf32>
    %c0_8 = arith.constant 0 : index
    %c0_9 = arith.constant 0 : index
    %c0_10 = arith.constant 0 : index
    %9 = vector.load %arg4[%c0_8, %c0_9, %c0_10] : memref<1x1x128xf32, #tpu.memory_space<vmem>>, vector<1x1x128xf32>
    %10 = vector.shape_cast %9 : vector<1x1x128xf32> to vector<1x128xf32>
    %cst = arith.constant dense<0.000000e+00> : vector<2x128xf32>
    %11 = vector.multi_reduction <add>, %7, %cst [0] : vector<1x2x128xf32> to vector<2x128xf32>
    %cst_11 = arith.constant dense<0.000000e+00> : vector<128xf32>
    %12 = vector.multi_reduction <add>, %11, %cst_11 [0] : vector<2x128xf32> to vector<128xf32>
    %13 = vector.shape_cast %12 : vector<128xf32> to vector<1x128xf32>
    %14 = arith.addf %10, %13 : vector<1x128xf32>
    %c0_12 = arith.constant 0 : index
    %c0_13 = arith.constant 0 : index
    %c0_14 = arith.constant 0 : index
    %15 = vector.load %arg4[%c0_12, %c0_13, %c0_14] : memref<1x1x128xf32, #tpu.memory_space<vmem>>, vector<1x1x128xf32>
    %16 = vector.shape_cast %15 : vector<1x1x128xf32> to vector<1x128xf32>
    %17 = vector.shape_cast %14 : vector<1x128xf32> to vector<1x1x128xf32>
    tpu.vector_store %arg4[%c0_12, %c0_13, %c0_14], %17 {strides = array<i32>} : memref<1x1x128xf32, #tpu.memory_space<vmem>>, vector<1x1x128xf32>,
    %c0_15 = arith.constant 0 : index
    %c0_16 = arith.constant 0 : index
    %c0_17 = arith.constant 0 : index
    %18 = vector.load %arg5[%c0_15, %c0_16, %c0_17] : memref<1x1x128xf32, #tpu.memory_space<vmem>>, vector<1x1x128xf32>
    %19 = vector.shape_cast %18 : vector<1x1x128xf32> to vector<1x128xf32>
    %cst_18 = arith.constant dense<0.000000e+00> : vector<2x128xf32>
    %20 = vector.multi_reduction <add>, %8, %cst_18 [0] : vector<1x2x128xf32> to vector<2x128xf32>
    %cst_19 = arith.constant dense<0.000000e+00> : vector<128xf32>
    %21 = vector.multi_reduction <add>, %20, %cst_19 [0] : vector<2x128xf32> to vector<128xf32>
    %22 = vector.shape_cast %21 : vector<128xf32> to vector<1x128xf32>
    %23 = arith.addf %19, %22 : vector<1x128xf32>
    %c0_20 = arith.constant 0 : index
    %c0_21 = arith.constant 0 : index
    %c0_22 = arith.constant 0 : index
    %24 = vector.load %arg5[%c0_20, %c0_21, %c0_22] : memref<1x1x128xf32, #tpu.memory_space<vmem>>, vector<1x1x128xf32>
    %25 = vector.shape_cast %24 : vector<1x1x128xf32> to vector<1x128xf32>
    %26 = vector.shape_cast %23 : vector<1x128xf32> to vector<1x1x128xf32>
    tpu.vector_store %arg5[%c0_20, %c0_21, %c0_22], %26 {strides = array<i32>} : memref<1x1x128xf32, #tpu.memory_space<vmem>>, vector<1x1x128xf32>,
    return
  }
  func.func @transform_0(%arg0: i32, %arg1: i32) -> (i32, i32, i32, i32) {
    %c0_i32 = arith.constant 0 : i32
    %c0_i32_0 = arith.constant 0 : i32
    %c0_i32_1 = arith.constant 0 : i32
    return %arg0, %c0_i32, %arg1, %c0_i32_0 : i32, i32, i32, i32
  }
  func.func @transform_1(%arg0: i32, %arg1: i32) -> (i32, i32, i32, i32) {
    %c0_i32 = arith.constant 0 : i32
    %c0_i32_0 = arith.constant 0 : i32
    %c0_i32_1 = arith.constant 0 : i32
    return %arg0, %c0_i32, %arg1, %c0_i32_0 : i32, i32, i32, i32
  }
  func.func @transform_2(%arg0: i32, %arg1: i32) -> (i32, i32, i32) {
    %c0_i32 = arith.constant 0 : i32
    %c0_i32_0 = arith.constant 0 : i32
    %c0_i32_1 = arith.constant 0 : i32
    return %arg0, %c0_i32, %c0_i32_0 : i32, i32, i32
  }
  func.func @transform_3(%arg0: i32, %arg1: i32) -> (i32, i32, i32) {
    %c0_i32 = arith.constant 0 : i32
    %c0_i32_0 = arith.constant 0 : i32
    %c0_i32_1 = arith.constant 0 : i32
    return %arg0, %c0_i32, %c0_i32_0 : i32, i32, i32
  }
}

</mosaic_0001>

<llo_original>
// kernel: dice_loss.1
$region0: #{dice_loss.1}
  #allocation0 [shape = 'u32[]', space=smem, size = 0x4, offset = 0x4, fixed_abs, tag = 'smem constant byte address 0x4 - core index']
  #allocation1 [shape = 'u32[144,128]{1,0:T(1,128)}', space=vmem, size = 0x12000, scoped, tag = 'internal scratch']
  %s0 = inlined_call_operand.vmem [shape: f32[2,4,2,128], index: 0, kind: input, shape index: {}]
  %s1 = inlined_call_operand.vmem [shape: f32[2,4,2,128], index: 1, kind: input, shape index: {}]
  %s2 = inlined_call_operand.vmem [shape: f32[2,1,128], index: 2, kind: output, shape index: {0}]
  %s3 = inlined_call_operand.vmem [shape: f32[2,1,128], index: 3, kind: output, shape index: {1}]
  %4 = xla_tuple %s2, %s3
  %s5 = sld [smem:[#allocation0]]
  $region53: #{dice_loss.1} parent=0
    _
  %s7 = ssub.s32 1, %s5
  %s8 = scalar_select 0, %s7, %s5
  loop: start=0, step=1, limit=4
  $region2: #{dice_loss.1} parent=0 // loop_pre_header
    _
  $region3: #{dice_loss.1} parent=0 // loop_header
    %s10 = sphi 0, %s14
    %p11 = scmp.ge.s32.totalorder %s10, 4
    %s17 = sphi 0, %s29
    %s18 = sphi 0, %s25
    %s19 = sphi 0, %s17
    %s20 = sphi 0, %s18
    %s21 = sphi 0, %s19
    %s22 = sphi 0, %s20
    %s34 = sphi 0, %s36
    %s37 = sphi 0, %s34
    %s38 = sphi 0, %s37
    %s54 = sphi 0, %s38
    %s62 = sphi 0, %s64
    %s65 = sphi 0, %s62
    %s66 = sphi 0, %s65
    %s82 = sphi 0, %s66
    %s88 = sphi 0, %s90
    %s91 = sphi 0, %s88
    %s92 = sphi 0, %s91
    %s108 = sphi 0, %s92
    %s114 = sphi 0, %s116
    %s117 = sphi 0, %s114
    %s118 = sphi 0, %s117
    %s134 = sphi 0, %s118
  $region4: #{dice_loss.1} parent=0 // loop_header_branch
    %13 = sbr.rel (%p11) target = $region8
  $region5: #{dice_loss.1} parent=0 // loop_body
    %s15 = ssub.s32 %s10, 1
    %s16 = ssub.s32 %s10, 2
    %s23 = sadd.s32 1, %s18
    %p24 = scmp.ge.s32.totalorder %s23, 1
    %s25 = scalar_select %p24, 0, %s23
    %s26 = sadd.s32 1, %s17
    %s27 = scalar_select %p24, %s26, %s17
    %p28 = scmp.ge.s32.totalorder %s27, 2
    %s29 = scalar_select %p28, 0, %s27
    %s30 = ssub.s32 %s17, %s29
    %s31 = ssub.s32 %s18, %s25
    %s32 = sor.u32 %s30, %s31
    %p33 = scmp.eq.s32.totalorder %s32, 0
    %s35 = sadd.s32 %s34, 1
    %s36 = scalar_select %p33, %s34, %s35
    %p39 = pneg %p33
    %p40 = scmp.eq.s32.totalorder %s10, 1
    %p41 = por %p39, %p40
    %p42 = scmp.ne.s32.totalorder %s34, %s37
    %p43 = scmp.eq.s32.totalorder %s10, 0
    %p44 = por %p42, %p43
    %p45 = scmp.ne.s32.totalorder %s34, %s37
    %p46 = scmp.eq.s32.totalorder %s15, 1
    %p47 = por %p45, %p46
    %p48 = scmp.ne.s32.totalorder %s37, %s38
    %p49 = scmp.eq.s32.totalorder %s15, 0
    %p50 = por %p48, %p49
    %p51 = scmp.ne.s32.totalorder %s37, %s38
    %p52 = scmp.eq.s32.totalorder %s16, 1
    %p53 = por %p51, %p52
    %p55 = scmp.ne.s32.totalorder %s38, %s54
    %p56 = scmp.eq.s32.totalorder %s16, 0
    %p57 = por %p55, %p56
    %s58 = ssub.s32 %s17, %s29
    %s59 = ssub.s32 %s18, %s25
    %s60 = sor.u32 %s58, %s59
    %p61 = scmp.eq.s32.totalorder %s60, 0
    %s63 = sadd.s32 %s62, 1
    %s64 = scalar_select %p61, %s62, %s63
    %p67 = pneg %p61
    %p68 = scmp.eq.s32.totalorder %s10, 1
    %p69 = por %p67, %p68
    %p70 = scmp.ne.s32.totalorder %s62, %s65
    %p71 = scmp.eq.s32.totalorder %s10, 0
    %p72 = por %p70, %p71
    %p73 = scmp.ne.s32.totalorder %s62, %s65
    %p74 = scmp.eq.s32.totalorder %s15, 1
    %p75 = por %p73, %p74
    %p76 = scmp.ne.s32.totalorder %s65, %s66
    %p77 = scmp.eq.s32.totalorder %s15, 0
    %p78 = por %p76, %p77
    %p79 = scmp.ne.s32.totalorder %s65, %s66
    %p80 = scmp.eq.s32.totalorder %s16, 1
    %p81 = por %p79, %p80
    %p83 = scmp.ne.s32.totalorder %s66, %s82
    %p84 = scmp.eq.s32.totalorder %s16, 0
    %p85 = por %p83, %p84
    %s86 = ssub.s32 %s17, %s29
    %p87 = scmp.eq.s32.totalorder %s86, 0
    %s89 = sadd.s32 %s88, 1
    %s90 = scalar_select %p87, %s88, %s89
    %p93 = pneg %p87
    %p94 = scmp.eq.s32.totalorder %s10, 1
    %p95 = por %p93, %p94
    %p96 = scmp.ne.s32.totalorder %s88, %s91
    %p97 = scmp.eq.s32.totalorder %s10, 0
    %p98 = por %p96, %p97
    %p99 = scmp.ne.s32.totalorder %s88, %s91
    %p100 = scmp.eq.s32.totalorder %s15, 1
    %p101 = por %p99, %p100
    %p102 = scmp.ne.s32.totalorder %s91, %s92
    %p103 = scmp.eq.s32.totalorder %s15, 0
    %p104 = por %p102, %p103
    %p105 = scmp.ne.s32.totalorder %s91, %s92
    %p106 = scmp.eq.s32.totalorder %s16, 1
    %p107 = por %p105, %p106
    %p109 = scmp.ne.s32.totalorder %s92, %s108
    %p110 = scmp.eq.s32.totalorder %s16, 0
    %p111 = por %p109, %p110
    %s112 = ssub.s32 %s17, %s29
    %p113 = scmp.eq.s32.totalorder %s112, 0
    %s115 = sadd.s32 %s114, 1
    %s116 = scalar_select %p113, %s114, %s115
    %p119 = pneg %p113
    %p120 = scmp.eq.s32.totalorder %s10, 1
    %p121 = por %p119, %p120
    %p122 = scmp.ne.s32.totalorder %s114, %s117
    %p123 = scmp.eq.s32.totalorder %s10, 0
    %p124 = por %p122, %p123
    %p125 = scmp.ne.s32.totalorder %s114, %s117
    %p126 = scmp.eq.s32.totalorder %s15, 1
    %p127 = por %p125, %p126
    %p128 = scmp.ne.s32.totalorder %s117, %s118
    %p129 = scmp.eq.s32.totalorder %s15, 0
    %p130 = por %p128, %p129
    %p131 = scmp.ne.s32.totalorder %s117, %s118
    %p132 = scmp.eq.s32.totalorder %s16, 1
    %p133 = por %p131, %p132
    %p135 = scmp.ne.s32.totalorder %s118, %s134
    %p136 = scmp.eq.s32.totalorder %s16, 0
    %p137 = por %p135, %p136
    %p138 = scmp.le.s32.totalorder 1, %s10
    %p139 = scmp.lt.s32.totalorder %s10, 3
    %p140 = pnand %p138, %p139
    %p141 = pneg %p140
    // Predicated region
    $region9: #{dice_loss.1} parent=5 // pred_check
      _
    $region10: #{dice_loss.1} parent=5 // pred_check_branch
      %143 = sbr.rel (%p140) target = $region12
    $region11: #{dice_loss.1} parent=5 // pred_region
      %s144 = ssub.s32 %s10, 1
    $region12: #{dice_loss.1} parent=5 // pred_fallthru
      _
    %p145 = scmp.lt.s32.totalorder %s10, 2
    // Predicated region
    $region13: #{dice_loss.1} parent=5 // pred_check
      %p146 = pneg %p145
    $region14: #{dice_loss.1} parent=5 // pred_check_branch
      %148 = sbr.rel (%p146) target = $region16
    $region15: #{dice_loss.1} parent=5 // pred_region
      // Predicated region
      $region17: #{dice_loss.1} parent=15 // pred_check
        %p149 = pneg %p44
      $region18: #{dice_loss.1} parent=15 // pred_check_branch
        %151 = sbr.rel (%p149) target = $region20
      $region19: #{dice_loss.1} parent=15 // pred_region
        %p152 = scmp.lt.s32.totalorder %s17, 1
        %s153 = scalar_select %p152, %s17, 1
        %p154 = scmp.lt.s32.totalorder %s18, 0
        %s155 = scalar_select %p154, %s18, 0
        %s156 = smul.addr %s153, 4
        %s157 = sadd.s32 %s155, %s156
        %s158 = smul.addr %s157, 2
        %s159 = scalar_lea.vmem %s0, %s158
      $region20: #{dice_loss.1} parent=15 // pred_fallthru
        _
      // Predicated region
      $region21: #{dice_loss.1} parent=15 // pred_check
        %p160 = pneg %p72
      $region22: #{dice_loss.1} parent=15 // pred_check_branch
        %162 = sbr.rel (%p160) target = $region24
      $region23: #{dice_loss.1} parent=15 // pred_region
        %p163 = scmp.lt.s32.totalorder %s17, 1
        %s164 = scalar_select %p163, %s17, 1
        %p165 = scmp.lt.s32.totalorder %s18, 0
        %s166 = scalar_select %p165, %s18, 0
        %s167 = smul.addr %s164, 4
        %s168 = sadd.s32 %s166, %s167
        %s169 = smul.addr %s168, 2
        %s170 = scalar_lea.vmem %s1, %s169
      $region24: #{dice_loss.1} parent=15 // pred_fallthru
        _
    $region16: #{dice_loss.1} parent=5 // pred_fallthru
      _
    %p171 = scmp.le.s32.totalorder 1, %s10
    %p172 = scmp.lt.s32.totalorder %s10, 3
    %p173 = pnand %p171, %p172
    %p174 = pneg %p173
    // Predicated region
    $region25: #{dice_loss.1} parent=5 // pred_check
      _
    $region26: #{dice_loss.1} parent=5 // pred_check_branch
      %176 = sbr.rel (%p173) target = $region28
    $region27: #{dice_loss.1} parent=5 // pred_region
      %s177 = ssub.s32 %s10, 1
      %p178 = scmp.lt.s32.totalorder %s19, 1
      %s179 = scalar_select %p178, %s19, 1
      %p180 = scmp.lt.s32.totalorder %s20, 0
      %s181 = scalar_select %p180, %s20, 0
      %s182 = smul.addr %s179, 4
      %s183 = sadd.s32 %s181, %s182
      %s184 = smul.addr %s183, 2
      %s185 = scalar_lea.vmem %s0, %s184
      %p186 = pneg %p50
      %p187 = pneg %p47
      %p188 = scmp.lt.s32.totalorder %s19, 1
      %s189 = scalar_select %p188, %s19, 1
      %p190 = scmp.lt.s32.totalorder %s20, 0
      %s191 = scalar_select %p190, %s20, 0
      %s192 = smul.addr %s189, 4
      %s193 = sadd.s32 %s191, %s192
      %s194 = smul.addr %s193, 2
      %s195 = scalar_lea.vmem %s1, %s194
      %p196 = pneg %p78
      %p197 = pneg %p75
      %p198 = pneg %p104
      %p199 = pneg %p101
      %p200 = scmp.lt.s32.totalorder %s19, 1
      %s201 = scalar_select %p200, %s19, 1
      %s202 = scalar_lea.vmem %s2, %s201
      %p203 = pneg %p130
      %p204 = pneg %p127
      %p205 = scmp.lt.s32.totalorder %s19, 1
      %s206 = scalar_select %p205, %s19, 1
      %s207 = scalar_lea.vmem %s3, %s206
      %p208 = scmp.lt.s32.totalorder %s19, 1
      %s209 = scalar_select %p208, %s19, 1
      %p210 = scmp.lt.s32.totalorder %s20, 0
      %s211 = scalar_select %p210, %s20, 0
      %s212 = smul.addr %s209, 4
      %s213 = sadd.s32 %s211, %s212
      %s214 = smul.addr %s213, 2
      %s215 = scalar_lea.vmem %s0, %s214
      %p216 = scmp.lt.s32.totalorder %s19, 1
      %s217 = scalar_select %p216, %s19, 1
      %p218 = scmp.lt.s32.totalorder %s20, 0
      %s219 = scalar_select %p218, %s20, 0
      %s220 = smul.addr %s217, 4
      %s221 = sadd.s32 %s219, %s220
      %s222 = smul.addr %s221, 2
      %s223 = scalar_lea.vmem %s1, %s222
      %p224 = scmp.lt.s32.totalorder %s19, 1
      %s225 = scalar_select %p224, %s19, 1
      %s226 = scalar_lea.vmem %s2, %s225
      %p227 = scmp.lt.s32.totalorder %s19, 1
      %s228 = scalar_select %p227, %s19, 1
      %s229 = scalar_lea.vmem %s3, %s228
      %p230 = scmp.eq.s32.totalorder %s20, 0
      // Predicated region
      $region29: #{dice_loss.1} parent=27 // pred_check
        %p231 = pneg %p230
      $region30: #{dice_loss.1} parent=27 // pred_check_branch
        %233 = sbr.rel (%p231) target = $region32
      $region31: #{dice_loss.1} parent=27 // pred_region
        %234 = vst [vmem:[%s226] sm:$0x1] 0.0
        %235 = vst [vmem:[%s229] sm:$0x1] 0.0
      $region32: #{dice_loss.1} parent=27 // pred_fallthru
        _
      %v236 = vld [vmem:[%s215] sm:$0x3]
      %v237 = vld [vmem:[%s223] sm:$0x3]
      %v238 = vmul.f32 %v236, %v237
      %v239 = vadd.f32 %v236, %v237
      %v240 = vld [vmem:[%s226] sm:$0x1]
      %v241 = vadd.f32 %v238, 0.0
      %vm242 = vcmask 1041408
      %v243 = vsel %vm242, %v241, 0.0
      %v244 = vrot.slane %v243, 4
      %v245 = vadd.f32 %v243, %v244
      %v246 = vrot.slane %v245, 2
      %v247 = vadd.f32 %v245, %v246
      %v248 = vrot.slane %v247, 1
      %v249 = vadd.f32 %v247, %v248
      %v250 = vadd.f32 %v240, %v249
      %251 = vst [vmem:[%s226] sm:$0x1] %v250
      %v252 = vld [vmem:[%s229] sm:$0x1]
      %v253 = vadd.f32 %v239, 0.0
      %v254 = vsel %vm242, %v253, 0.0
      %v255 = vrot.slane %v254, 4
      %v256 = vadd.f32 %v254, %v255
      %v257 = vrot.slane %v256, 2
      %v258 = vadd.f32 %v256, %v257
      %v259 = vrot.slane %v258, 1
      %v260 = vadd.f32 %v258, %v259
      %v261 = vadd.f32 %v252, %v260
      %262 = vst [vmem:[%s229] sm:$0x1] %v261
      %p263 = scmp.lt.s32.totalorder %s19, 1
      %s264 = scalar_select %p263, %s19, 1
      %s265 = scalar_lea.vmem %s2, %s264
      %p266 = scmp.lt.s32.totalorder %s19, 1
      %s267 = scalar_select %p266, %s19, 1
      %s268 = scalar_lea.vmem %s3, %s267
      // Predicated region
      $region33: #{dice_loss.1} parent=27 // pred_check
        %p269 = pneg %p101
      $region34: #{dice_loss.1} parent=27 // pred_check_branch
        %271 = sbr.rel (%p269) target = $region36
      $region35: #{dice_loss.1} parent=27 // pred_region
        _
      $region36: #{dice_loss.1} parent=27 // pred_fallthru
        _
      // Predicated region
      $region37: #{dice_loss.1} parent=27 // pred_check
        %p272 = pneg %p127
      $region38: #{dice_loss.1} parent=27 // pred_check_branch
        %274 = sbr.rel (%p272) target = $region40
      $region39: #{dice_loss.1} parent=27 // pred_region
        _
      $region40: #{dice_loss.1} parent=27 // pred_fallthru
        _
    $region28: #{dice_loss.1} parent=5 // pred_fallthru
      _
    %p275 = scmp.le.s32.totalorder 2, %s10
    // Predicated region
    $region41: #{dice_loss.1} parent=5 // pred_check
      %p276 = pneg %p275
    $region42: #{dice_loss.1} parent=5 // pred_check_branch
      %278 = sbr.rel (%p276) target = $region44
    $region43: #{dice_loss.1} parent=5 // pred_region
      %s279 = ssub.s32 %s10, 2
      // Predicated region
      $region45: #{dice_loss.1} parent=43 // pred_check
        %p280 = pneg %p107
      $region46: #{dice_loss.1} parent=43 // pred_check_branch
        %282 = sbr.rel (%p280) target = $region48
      $region47: #{dice_loss.1} parent=43 // pred_region
        %p283 = scmp.lt.s32.totalorder %s21, 1
        %s284 = scalar_select %p283, %s21, 1
        %s285 = scalar_lea.vmem %s2, %s284
      $region48: #{dice_loss.1} parent=43 // pred_fallthru
        _
      // Predicated region
      $region49: #{dice_loss.1} parent=43 // pred_check
        %p286 = pneg %p133
      $region50: #{dice_loss.1} parent=43 // pred_check_branch
        %288 = sbr.rel (%p286) target = $region52
      $region51: #{dice_loss.1} parent=43 // pred_region
        %p289 = scmp.lt.s32.totalorder %s21, 1
        %s290 = scalar_select %p289, %s21, 1
        %s291 = scalar_lea.vmem %s3, %s290
      $region52: #{dice_loss.1} parent=43 // pred_fallthru
        _
    $region44: #{dice_loss.1} parent=5 // pred_fallthru
      _
  $region6: #{dice_loss.1} parent=0 // loop_footer
    %s14 = sadd.s32 1, %s10
  $region7: #{dice_loss.1} parent=0 // loop_footer_branch
    %9 = sbr.rel target = $region3
  $region8: #{dice_loss.1} parent=0 // loop_exit
    _

</llo_original>
